<compile_context>
chip_gen: v5e
topology: v5e:2x2
jax: 0.10.0
libtpu: 0.0.40
codegen_flags: <defaults>
</compile_context>

<pallas_src>
import functools

import jax
import jax.numpy as jnp
from jax import lax
from jax.experimental import pallas as pl
from jax.experimental.pallas import tpu as pltpu

_LANE_CANDIDATES = (512, 256, 128)
_TARGET_CHUNK_ELEMS = 512 * 1024      # ~2 MiB of f32 per input buffer per chunk


def _iou_kernel(pred_ref, targ_ref, iou_ref, inter_acc, merged_acc, *,
                smooth, total_rows, mask_tail):
    """Grid step (b, k): accumulate partial sums for sample b over chunk k."""
    k = pl.program_id(1)

    @pl.when(k == 0)
    def _init():
        inter_acc[...] = jnp.zeros_like(inter_acc)
        merged_acc[...] = jnp.zeros_like(merged_acc)

    # Blocks arrive as (1, r_tile, lane) in native dtype; upcast after the DMA.
    pred = pred_ref[0].astype(jnp.float32)   # (r_tile, lane)
    targ = targ_ref[0].astype(jnp.float32)   # (r_tile, lane)

    is_one = pred >= jnp.float32(0.5)

    if mask_tail:
        # Ragged last chunk: rows past `total_rows` hold undefined data.
        # Masking targ->0 and is_one->False makes them contribute nothing to
        # either accumulator (pred pad -> 0 count, targ pad -> 0 sum).
        r_tile = pred.shape[0]
        row_ids = lax.broadcasted_iota(jnp.int32, pred.shape, 0)
        valid = (k * r_tile + row_ids) < total_rows
        targ = jnp.where(valid, targ, jnp.float32(0.0))
        is_one = jnp.logical_and(valid, is_one)

    # Reduce this chunk over rows in-register; only two tiny (1, lane) strips
    # are read-modify-written per chunk (no full-tile accumulator RMW).
    #   inter  partial: sum over elements where pred binarizes to 1 of targ
    #   merged partial: sum(targ) + count(pred_bin == 1)
    inter_acc[...] += jnp.sum(jnp.where(is_one, targ, jnp.float32(0.0)),
                              axis=0, keepdims=True)
    merged_acc[...] += jnp.sum(targ + is_one.astype(jnp.float32),
                               axis=0, keepdims=True)

    @pl.when(k == pl.num_programs(1) - 1)
    def _finalize():
        # Single tiny cross-lane (XLU) reduction per sample.
        inter = jnp.sum(inter_acc[...])
        union = jnp.sum(merged_acc[...]) - inter
        iou = inter / (union + jnp.float32(smooth))
        iou_ref[...] = jnp.broadcast_to(iou, iou_ref.shape).astype(iou_ref.dtype)


def iou_pallas(prediction, target, smooth=1e-05, *, max_chunk_rows=None):
    assert prediction.shape == target.shape, (
        'the dimensions of prediction and target do not match/iou')
    batch_size = prediction.shape[0]

    # Keep the native dtype on the wire; upcast happens inside the kernel.
    pred2d = jnp.reshape(prediction, (batch_size, -1))
    targ2d = jnp.reshape(target, (batch_size, -1))
    n = pred2d.shape[1]

    # Pick a lane width that divides n exactly (no padding pass needed).
    lane = next((l for l in _LANE_CANDIDATES if n % l == 0), None)
    if lane is None:
        # Rare ragged case: pad the flat axis up to a multiple of 128.  Zero
        # padding is neutral (pred=0 binarizes to 0, targ=0 adds nothing) but
        # costs one extra read+write pass; 128-divisible shapes skip this.
        lane = 128
        n_pad = (-(-n // lane)) * lane
        pred2d = jnp.pad(pred2d, ((0, 0), (0, n_pad - n)))
        targ2d = jnp.pad(targ2d, ((0, 0), (0, n_pad - n)))
        n = n_pad

    rows = n // lane
    if max_chunk_rows is None:
        max_chunk_rows = max(8, (_TARGET_CHUNK_ELEMS // lane) // 8 * 8)

    if rows <= max_chunk_rows:
        r_tile = rows            # single chunk; full-extent sublane block
        num_chunks = 1
    else:
        r_tile = max_chunk_rows  # multiple of 8
        num_chunks = -(-rows // r_tile)
    mask_tail = (num_chunks * r_tile) != rows

    # Contiguous reshape: free (no padding, no copy pass).
    pred3d = pred2d.reshape(batch_size, rows, lane)
    targ3d = targ2d.reshape(batch_size, rows, lane)

    kernel = functools.partial(_iou_kernel, smooth=smooth, total_rows=rows,
                               mask_tail=mask_tail)

    per_sample = pl.pallas_call(
        kernel,
        out_shape=jax.ShapeDtypeStruct((batch_size, 8, 128), jnp.float32),
        grid_spec=pltpu.PrefetchScalarGridSpec(
            num_scalar_prefetch=0,
            grid=(batch_size, num_chunks),
            in_specs=[
                pl.BlockSpec((1, r_tile, lane), lambda b, k: (b, k, 0)),
                pl.BlockSpec((1, r_tile, lane), lambda b, k: (b, k, 0)),
            ],
            out_specs=pl.BlockSpec((1, 8, 128), lambda b, k: (b, 0, 0)),
            scratch_shapes=[
                pltpu.VMEM((1, lane), jnp.float32),   # intersection partials
                pltpu.VMEM((1, lane), jnp.float32),   # sum(targ)+count(pred_bin)
            ],
        ),
        compiler_params=pltpu.CompilerParams(
            dimension_semantics=("parallel", "arbitrary")),
    )(pred3d, targ3d)

    # Tiny batch mean in glue (per-sample iou lives at [b, 0, 0]).
    return jnp.mean(per_sample[:, 0, 0])


def iou_ref(prediction, target, smooth=1e-05):
    # Pure-JAX reference mirroring the PyTorch code (value-level).
    b = prediction.shape[0]
    pred = jnp.where(prediction.astype(jnp.float32) >= 0.5, 1.0, 0.0).reshape(b, -1)
    targ = target.astype(jnp.float32).reshape(b, -1)
    inter = jnp.sum(pred * targ, axis=1)
    union = jnp.sum(targ, axis=1) + jnp.sum(pred, axis=1) - inter
    return jnp.mean(inter / (union + smooth))


if __name__ == "__main__":
    key = jax.random.PRNGKey(0)
    k1, k2, k3, k4 = jax.random.split(key, 4)

    # Small shapes consistent with a segmentation-style IoU: (B, C, H, W)
    B, C, H, W = 2, 4, 16, 16
    prediction = jax.random.uniform(k1, (B, C, H, W), dtype=jnp.float32)
    target = (jax.random.uniform(k2, (B, C, H, W), dtype=jnp.float32) > 0.5
              ).astype(jnp.float32)

    result = iou_pallas(prediction, target)
    jax.block_until_ready(result)
    expected = iou_ref(prediction, target)
    assert jnp.allclose(result, expected, atol=1e-5, rtol=1e-5), (
        f"mismatch (small): kernel={result} ref={expected}")

    # Larger single-chunk path (no padding: 3*256*384 = 294912 = 576 * 512),
    # odd batch size across the parallel axis.
    B2, C2, H2, W2 = 3, 3, 256, 384
    prediction2 = jax.random.uniform(k3, (B2, C2, H2, W2), dtype=jnp.float32)
    target2 = (jax.random.uniform(k4, (B2, C2, H2, W2), dtype=jnp.float32) > 0.5
               ).astype(jnp.float32)

    result2 = iou_pallas(prediction2, target2)
    jax.block_until_ready(result2)
    expected2 = iou_ref(prediction2, target2)
    assert jnp.allclose(result2, expected2, atol=1e-5, rtol=1e-5), (
        f"mismatch (single-chunk): kernel={result2} ref={expected2}")

    # Force the multi-chunk path with a ragged (masked) last chunk:
    # rows=576, r_tile=80 -> 8 chunks, last chunk has 16 valid rows of 80.
    result3 = iou_pallas(prediction2, target2, max_chunk_rows=80)
    jax.block_until_ready(result3)
    assert jnp.allclose(result3, expected2, atol=1e-5, rtol=1e-5), (
        f"mismatch (masked multi-chunk): kernel={result3} ref={expected2}")

    print("KERNEL_OK")
</pallas_src>

<mosaic_0001>
module attributes {stable_mosaic.version = 11 : i64} {
  func.func @_iou_kernel(%arg0: i32, %arg1: i32, %arg2: memref<1x2x512xf32, #tpu.memory_space<vmem>>, %arg3: memref<1x2x512xf32, #tpu.memory_space<vmem>>, %arg4: memref<1x8x128xf32, #tpu.memory_space<vmem>>, %arg5: memref<1x512xf32, #tpu.memory_space<vmem>>, %arg6: memref<1x512xf32, #tpu.memory_space<vmem>>) attributes {dimension_semantics = [#tpu.dimension_semantics<parallel>, #tpu.dimension_semantics<arbitrary>], iteration_bounds = array<i64: 2, 1>, scalar_prefetch = 0 : i64, scratch_operands = 2 : i64, tpu.core_type = #tpu.core_type<tc>, window_params = [{transform_indices = @transform_0, window_bounds = array<i64: 1, 2, 512>}, {transform_indices = @transform_1, window_bounds = array<i64: 1, 2, 512>}, {transform_indices = @transform_2, window_bounds = array<i64: 1, 8, 128>}]} {
    %c0_i32 = arith.constant 0 : i32
    %0 = arith.cmpi eq, %arg1, %c0_i32 : i32
    %1 = arith.extui %0 : i1 to i32
    %c0_i32_0 = arith.constant 0 : i32
    %2 = arith.cmpi ne, %1, %c0_i32_0 : i32
    scf.if %2 {
      %cst_19 = arith.constant 0.000000e+00 : f32
      %27 = vector.broadcast %cst_19 : f32 to vector<1x512xf32>
      %c0_20 = arith.constant 0 : index
      %c0_21 = arith.constant 0 : index
      %28 = vector.load %arg5[%c0_20, %c0_21] : memref<1x512xf32, #tpu.memory_space<vmem>>, vector<1x512xf32>
      tpu.vector_store %arg5[%c0_20, %c0_21], %27 {strides = array<i32>} : memref<1x512xf32, #tpu.memory_space<vmem>>, vector<1x512xf32>,
      %cst_22 = arith.constant 0.000000e+00 : f32
      %29 = vector.broadcast %cst_22 : f32 to vector<1x512xf32>
      %c0_23 = arith.constant 0 : index
      %c0_24 = arith.constant 0 : index
      %30 = vector.load %arg6[%c0_23, %c0_24] : memref<1x512xf32, #tpu.memory_space<vmem>>, vector<1x512xf32>
      tpu.vector_store %arg6[%c0_23, %c0_24], %29 {strides = array<i32>} : memref<1x512xf32, #tpu.memory_space<vmem>>, vector<1x512xf32>,
    } else {
    }
    %c0 = arith.constant 0 : index
    %c0_1 = arith.constant 0 : index
    %c0_2 = arith.constant 0 : index
    %3 = vector.load %arg2[%c0, %c0_1, %c0_2] : memref<1x2x512xf32, #tpu.memory_space<vmem>>, vector<1x2x512xf32>
    %4 = vector.shape_cast %3 : vector<1x2x512xf32> to vector<2x512xf32>
    %c0_3 = arith.constant 0 : index
    %c0_4 = arith.constant 0 : index
    %c0_5 = arith.constant 0 : index
    %5 = vector.load %arg3[%c0_3, %c0_4, %c0_5] : memref<1x2x512xf32, #tpu.memory_space<vmem>>, vector<1x2x512xf32>
    %6 = vector.shape_cast %5 : vector<1x2x512xf32> to vector<2x512xf32>
    %cst = arith.constant 5.000000e-01 : f32
    %7 = vector.broadcast %cst : f32 to vector<2x512xf32>
    %8 = arith.cmpf oge, %4, %7 : vector<2x512xf32>
    %c0_6 = arith.constant 0 : index
    %c0_7 = arith.constant 0 : index
    %9 = vector.load %arg5[%c0_6, %c0_7] : memref<1x512xf32, #tpu.memory_space<vmem>>, vector<1x512xf32>
    %cst_8 = arith.constant 0.000000e+00 : f32
    %10 = vector.broadcast %cst_8 : f32 to vector<2x512xf32>
    %11 = arith.select %8, %6, %10 : vector<2x512xi1>, vector<2x512xf32>
    %cst_9 = arith.constant dense<0.000000e+00> : vector<512xf32>
    %12 = vector.multi_reduction <add>, %11, %cst_9 [0] : vector<2x512xf32> to vector<512xf32>
    %13 = vector.shape_cast %12 : vector<512xf32> to vector<1x512xf32>
    %14 = arith.addf %9, %13 : vector<1x512xf32>
    %c0_10 = arith.constant 0 : index
    %c0_11 = arith.constant 0 : index
    %15 = vector.load %arg5[%c0_10, %c0_11] : memref<1x512xf32, #tpu.memory_space<vmem>>, vector<1x512xf32>
    tpu.vector_store %arg5[%c0_10, %c0_11], %14 {strides = array<i32>} : memref<1x512xf32, #tpu.memory_space<vmem>>, vector<1x512xf32>,
    %c0_12 = arith.constant 0 : index
    %c0_13 = arith.constant 0 : index
    %16 = vector.load %arg6[%c0_12, %c0_13] : memref<1x512xf32, #tpu.memory_space<vmem>>, vector<1x512xf32>
    %17 = arith.extui %8 : vector<2x512xi1> to vector<2x512xi32>
    %18 = arith.sitofp %17 : vector<2x512xi32> to vector<2x512xf32>
    %19 = arith.addf %6, %18 : vector<2x512xf32>
    %cst_14 = arith.constant dense<0.000000e+00> : vector<512xf32>
    %20 = vector.multi_reduction <add>, %19, %cst_14 [0] : vector<2x512xf32> to vector<512xf32>
    %21 = vector.shape_cast %20 : vector<512xf32> to vector<1x512xf32>
    %22 = arith.addf %16, %21 : vector<1x512xf32>
    %c0_15 = arith.constant 0 : index
    %c0_16 = arith.constant 0 : index
    %23 = vector.load %arg6[%c0_15, %c0_16] : memref<1x512xf32, #tpu.memory_space<vmem>>, vector<1x512xf32>
    tpu.vector_store %arg6[%c0_15, %c0_16], %22 {strides = array<i32>} : memref<1x512xf32, #tpu.memory_space<vmem>>, vector<1x512xf32>,
    %c0_i32_17 = arith.constant 0 : i32
    %24 = arith.cmpi eq, %arg1, %c0_i32_17 : i32
    %25 = arith.extui %24 : i1 to i32
    %c0_i32_18 = arith.constant 0 : i32
    %26 = arith.cmpi ne, %25, %c0_i32_18 : i32
    scf.if %26 {
      %c0_19 = arith.constant 0 : index
      %c0_20 = arith.constant 0 : index
      %27 = vector.load %arg5[%c0_19, %c0_20] : memref<1x512xf32, #tpu.memory_space<vmem>>, vector<1x512xf32>
      %28 = vector.shape_cast %27 : vector<1x512xf32> to vector<1x1x512xf32>
      %cst_21 = arith.constant dense<0.000000e+00> : vector<1xf32>
      %29 = vector.multi_reduction <add>, %28, %cst_21 [1, 2] : vector<1x1x512xf32> to vector<1xf32>
      %30 = vector.shape_cast %29 : vector<1xf32> to vector<1x1x1xf32>
      %31 = vector.extract %30[0, 0, 0] : f32 from vector<1x1x1xf32>
      %c0_22 = arith.constant 0 : index
      %c0_23 = arith.constant 0 : index
      %32 = vector.load %arg6[%c0_22, %c0_23] : memref<1x512xf32, #tpu.memory_space<vmem>>, vector<1x512xf32>
      %33 = vector.shape_cast %32 : vector<1x512xf32> to vector<1x1x512xf32>
      %cst_24 = arith.constant dense<0.000000e+00> : vector<1xf32>
      %34 = vector.multi_reduction <add>, %33, %cst_24 [1, 2] : vector<1x1x512xf32> to vector<1xf32>
      %35 = vector.shape_cast %34 : vector<1xf32> to vector<1x1x1xf32>
      %36 = vector.extract %35[0, 0, 0] : f32 from vector<1x1x1xf32>
      %37 = arith.subf %36, %31 : f32
      %cst_25 = arith.constant 9.99999974E-6 : f32
      %38 = arith.addf %37, %cst_25 : f32
      %39 = arith.divf %31, %38 : f32
      %40 = vector.broadcast %39 : f32 to vector<1x8x128xf32>
      %c0_26 = arith.constant 0 : index
      %c0_27 = arith.constant 0 : index
      %c0_28 = arith.constant 0 : index
      %41 = vector.load %arg4[%c0_26, %c0_27, %c0_28] : memref<1x8x128xf32, #tpu.memory_space<vmem>>, vector<1x8x128xf32>
      tpu.vector_store %arg4[%c0_26, %c0_27, %c0_28], %40 {strides = array<i32>} : memref<1x8x128xf32, #tpu.memory_space<vmem>>, vector<1x8x128xf32>,
    } else {
    }
    return
  }
  func.func @transform_0(%arg0: i32, %arg1: i32) -> (i32, i32, i32) {
    %c0_i32 = arith.constant 0 : i32
    %c0_i32_0 = arith.constant 0 : i32
    return %arg0, %arg1, %c0_i32 : i32, i32, i32
  }
  func.func @transform_1(%arg0: i32, %arg1: i32) -> (i32, i32, i32) {
    %c0_i32 = arith.constant 0 : i32
    %c0_i32_0 = arith.constant 0 : i32
    return %arg0, %arg1, %c0_i32 : i32, i32, i32
  }
  func.func @transform_2(%arg0: i32, %arg1: i32) -> (i32, i32, i32) {
    %c0_i32 = arith.constant 0 : i32
    %c0_i32_0 = arith.constant 0 : i32
    %c0_i32_1 = arith.constant 0 : i32
    return %arg0, %c0_i32, %c0_i32_0 : i32, i32, i32
  }
}

</mosaic_0001>

<llo_original>
// kernel: tpu_custom_call.1
$region0: #{tpu_custom_call.1}
  #allocation0 [shape = 'u32[]', space=smem, size = 0x4, offset = 0x4, fixed_abs, tag = 'smem constant byte address 0x4 - core index']
  #allocation1 [shape = 'u32[72,128]{1,0:T(1,128)}', space=vmem, size = 0x9000, scoped, tag = 'internal scratch']
  #allocation2 [shape = 'f32[1,512]{1,0:T(1,128)}', space=vmem, size = 0x800, scoped, tag = 'scratch operand']
  #allocation3 [shape = 'f32[1,512]{1,0:T(1,128)}', space=vmem, size = 0x800, scoped, tag = 'scratch operand']
  %s0 = inlined_call_operand.hbm [shape: f32[2,2,512], index: 0, kind: input, shape index: {}]
  %s1 = inlined_call_operand.hbm [shape: f32[2,2,512], index: 1, kind: input, shape index: {}]
  %s2 = inlined_call_operand.hbm [shape: f32[2,8,128], index: 2, kind: output, shape index: {}]
  %s3 = sld [smem:[#allocation0]]
  $region57: #{tpu_custom_call.1} parent=0
    _
  %s5 = ssub.s32 1, %s3
  %s6 = scalar_select 0, %s5, %s3
  $region1: #{tpu_custom_call.1} parent=0
    #allocation4 [shape = 'u8[8192]{0}', space=vmem, size = 0x2000, scoped, tag = 'input window, operand 0']
    #allocation5 [shape = 's32[2]{0}', space=sflag, size = 0x8, scoped, tag = 'scoped memory for tpu_custom_call.1']
    #allocation6 [shape = 's32[2]{0}', space=sflag, size = 0x8, scoped, tag = 'scoped memory for tpu_custom_call.1']
    #allocation7 [shape = 'u8[8192]{0}', space=vmem, size = 0x2000, scoped, tag = 'input window, operand 1']
    #allocation8 [shape = 's32[2]{0}', space=sflag, size = 0x8, scoped, tag = 'scoped memory for tpu_custom_call.1']
    #allocation9 [shape = 'u8[8192]{0}', space=vmem, size = 0x2000, scoped, tag = 'output window, operand 0']
    %7 = vsyncpa [#allocation5], 0
    %s8 = scalar_lea.sflag [#allocation5], 1
    %9 = vsyncpa %s8, 0
    %10 = vsyncpa [#allocation8], 0
    %s11 = scalar_lea.sflag [#allocation8], 1
    %12 = vsyncpa %s11, 0
    %13 = vsyncpa [#allocation6], 0
    %s14 = scalar_lea.sflag [#allocation6], 1
    %15 = vsyncpa %s14, 0
    loop: start=0, step=1, limit=4
    $region2: #{tpu_custom_call.1} parent=1 // loop_pre_header
      _
    $region3: #{tpu_custom_call.1} parent=1 // loop_header
      %s17 = sphi 0, %s21
      %p18 = scmp.ge.s32.totalorder %s17, 4
      %s24 = sphi 0, %s36
      %s25 = sphi 0, %s32
      %s26 = sphi 0, %s24
      %s27 = sphi 0, %s25
      %s28 = sphi 0, %s26
      %s29 = sphi 0, %s27
      %s41 = sphi 0, %s43
      %s44 = sphi 0, %s41
      %s45 = sphi 0, %s44
      %s61 = sphi 0, %s45
      %s69 = sphi 0, %s71
      %s72 = sphi 0, %s69
      %s73 = sphi 0, %s72
      %s89 = sphi 0, %s73
      %s95 = sphi 0, %s97
      %s98 = sphi 0, %s95
      %s99 = sphi 0, %s98
      %s115 = sphi 0, %s99
    $region4: #{tpu_custom_call.1} parent=1 // loop_header_branch
      %20 = sbr.rel (%p18) target = $region8
    $region5: #{tpu_custom_call.1} parent=1 // loop_body
      %s22 = ssub.s32 %s17, 1
      %s23 = ssub.s32 %s17, 2
      %s30 = sadd.s32 1, %s25
      %p31 = scmp.ge.s32.totalorder %s30, 1
      %s32 = scalar_select %p31, 0, %s30
      %s33 = sadd.s32 1, %s24
      %s34 = scalar_select %p31, %s33, %s24
      %p35 = scmp.ge.s32.totalorder %s34, 2
      %s36 = scalar_select %p35, 0, %s34
      %s37 = ssub.s32 %s24, %s36
      %s38 = ssub.s32 %s25, %s32
      %s39 = sor.u32 %s37, %s38
      %p40 = scmp.eq.s32.totalorder %s39, 0
      %s42 = sadd.s32 %s41, 1
      %s43 = scalar_select %p40, %s41, %s42
      %p46 = pneg %p40
      %p47 = scmp.eq.s32.totalorder %s17, 1
      %p48 = por %p46, %p47
      %p49 = scmp.ne.s32.totalorder %s41, %s44
      %p50 = scmp.eq.s32.totalorder %s17, 0
      %p51 = por %p49, %p50
      %p52 = scmp.ne.s32.totalorder %s41, %s44
      %p53 = scmp.eq.s32.totalorder %s22, 1
      %p54 = por %p52, %p53
      %p55 = scmp.ne.s32.totalorder %s44, %s45
      %p56 = scmp.eq.s32.totalorder %s22, 0
      %p57 = por %p55, %p56
      %p58 = scmp.ne.s32.totalorder %s44, %s45
      %p59 = scmp.eq.s32.totalorder %s23, 1
      %p60 = por %p58, %p59
      %p62 = scmp.ne.s32.totalorder %s45, %s61
      %p63 = scmp.eq.s32.totalorder %s23, 0
      %p64 = por %p62, %p63
      %s65 = ssub.s32 %s24, %s36
      %s66 = ssub.s32 %s25, %s32
      %s67 = sor.u32 %s65, %s66
      %p68 = scmp.eq.s32.totalorder %s67, 0
      %s70 = sadd.s32 %s69, 1
      %s71 = scalar_select %p68, %s69, %s70
      %p74 = pneg %p68
      %p75 = scmp.eq.s32.totalorder %s17, 1
      %p76 = por %p74, %p75
      %p77 = scmp.ne.s32.totalorder %s69, %s72
      %p78 = scmp.eq.s32.totalorder %s17, 0
      %p79 = por %p77, %p78
      %p80 = scmp.ne.s32.totalorder %s69, %s72
      %p81 = scmp.eq.s32.totalorder %s22, 1
      %p82 = por %p80, %p81
      %p83 = scmp.ne.s32.totalorder %s72, %s73
      %p84 = scmp.eq.s32.totalorder %s22, 0
      %p85 = por %p83, %p84
      %p86 = scmp.ne.s32.totalorder %s72, %s73
      %p87 = scmp.eq.s32.totalorder %s23, 1
      %p88 = por %p86, %p87
      %p90 = scmp.ne.s32.totalorder %s73, %s89
      %p91 = scmp.eq.s32.totalorder %s23, 0
      %p92 = por %p90, %p91
      %s93 = ssub.s32 %s24, %s36
      %p94 = scmp.eq.s32.totalorder %s93, 0
      %s96 = sadd.s32 %s95, 1
      %s97 = scalar_select %p94, %s95, %s96
      %p100 = pneg %p94
      %p101 = scmp.eq.s32.totalorder %s17, 1
      %p102 = por %p100, %p101
      %p103 = scmp.ne.s32.totalorder %s95, %s98
      %p104 = scmp.eq.s32.totalorder %s17, 0
      %p105 = por %p103, %p104
      %p106 = scmp.ne.s32.totalorder %s95, %s98
      %p107 = scmp.eq.s32.totalorder %s22, 1
      %p108 = por %p106, %p107
      %p109 = scmp.ne.s32.totalorder %s98, %s99
      %p110 = scmp.eq.s32.totalorder %s22, 0
      %p111 = por %p109, %p110
      %p112 = scmp.ne.s32.totalorder %s98, %s99
      %p113 = scmp.eq.s32.totalorder %s23, 1
      %p114 = por %p112, %p113
      %p116 = scmp.ne.s32.totalorder %s99, %s115
      %p117 = scmp.eq.s32.totalorder %s23, 0
      %p118 = por %p116, %p117
      %p119 = scmp.le.s32.totalorder 1, %s17
      %p120 = scmp.lt.s32.totalorder %s17, 3
      %p121 = pnand %p119, %p120
      %p122 = pneg %p121
      // Predicated region
      $region9: #{tpu_custom_call.1} parent=5 // pred_check
        _
      $region10: #{tpu_custom_call.1} parent=5 // pred_check_branch
        %124 = sbr.rel (%p121) target = $region12
      $region11: #{tpu_custom_call.1} parent=5 // pred_region
        %s125 = ssub.s32 %s17, 1
      $region12: #{tpu_custom_call.1} parent=5 // pred_fallthru
        _
      %p126 = scmp.lt.s32.totalorder %s17, 2
      // Predicated region
      $region13: #{tpu_custom_call.1} parent=5 // pred_check
        %p127 = pneg %p126
      $region14: #{tpu_custom_call.1} parent=5 // pred_check_branch
        %129 = sbr.rel (%p127) target = $region16
      $region15: #{tpu_custom_call.1} parent=5 // pred_region
        // Predicated region
        $region17: #{tpu_custom_call.1} parent=15 // pred_check
          %p130 = pneg %p51
        $region18: #{tpu_custom_call.1} parent=15 // pred_check_branch
          %132 = sbr.rel (%p130) target = $region20
        $region19: #{tpu_custom_call.1} parent=15 // pred_region
          %s133 = sand.u32 %s41, 1
          %s134 = scalar_lea.sflag [#allocation5], %s133
          %s135 = sand.u32 %s41, 1
          %s136 = smul.addr %s135, 8
          %s137 = scalar_lea.vmem [#allocation4], %s136
          %139 = vsyncadd %s134, 0
          %s140 = smul.addr %s25, 4
          %s141 = smul.addr %s24, 4
          %s142 = sadd.s32 %s140, %s141
          %s143 = smul.addr %s142, 2
          %s144 = scalar_lea.hbm %s0, %s143
          %s146 = sshll.u32 %s144, 4
          %s147 = int_to_ptr.hbm [resolvable:$true] %s146
          %s148 = sshll.u32 %s137, 4
          %s149 = int_to_ptr.vmem [resolvable:$true] %s148
          %151 = dma.hbm_to_vmem [thread:$0]  %s147, 128, %s149, %s134
        $region20: #{tpu_custom_call.1} parent=15 // pred_fallthru
          _
        // Predicated region
        $region21: #{tpu_custom_call.1} parent=15 // pred_check
          %p152 = pneg %p79
        $region22: #{tpu_custom_call.1} parent=15 // pred_check_branch
          %154 = sbr.rel (%p152) target = $region24
        $region23: #{tpu_custom_call.1} parent=15 // pred_region
          %s155 = sand.u32 %s69, 1
          %s156 = scalar_lea.sflag [#allocation8], %s155
          %s157 = sand.u32 %s69, 1
          %s158 = smul.addr %s157, 8
          %s159 = scalar_lea.vmem [#allocation7], %s158
          %161 = vsyncadd %s156, 0
          %s162 = smul.addr %s25, 4
          %s163 = smul.addr %s24, 4
          %s164 = sadd.s32 %s162, %s163
          %s165 = smul.addr %s164, 2
          %s166 = scalar_lea.hbm %s1, %s165
          %s168 = sshll.u32 %s166, 4
          %s169 = int_to_ptr.hbm [resolvable:$true] %s168
          %s170 = sshll.u32 %s159, 4
          %s171 = int_to_ptr.vmem [resolvable:$true] %s170
          %173 = dma.hbm_to_vmem [thread:$0]  %s169, 128, %s171, %s156
        $region24: #{tpu_custom_call.1} parent=15 // pred_fallthru
          _
      $region16: #{tpu_custom_call.1} parent=5 // pred_fallthru
        _
      %p174 = scmp.le.s32.totalorder 1, %s17
      %p175 = scmp.lt.s32.totalorder %s17, 3
      %p176 = pnand %p174, %p175
      %p177 = pneg %p176
      // Predicated region
      $region25: #{tpu_custom_call.1} parent=5 // pred_check
        _
      $region26: #{tpu_custom_call.1} parent=5 // pred_check_branch
        %179 = sbr.rel (%p176) target = $region28
      $region27: #{tpu_custom_call.1} parent=5 // pred_region
        %s180 = ssub.s32 %s17, 1
        %s181 = sand.u32 %s44, 1
        %s182 = scalar_lea.sflag [#allocation5], %s181
        %s183 = sand.u32 %s44, 1
        %s184 = smul.addr %s183, 8
        %s185 = scalar_lea.vmem [#allocation4], %s184
        // Predicated region
        $region29: #{tpu_custom_call.1} parent=27 // pred_check
          %p186 = pneg %p57
        $region30: #{tpu_custom_call.1} parent=27 // pred_check_branch
          %188 = sbr.rel (%p186) target = $region32
        $region31: #{tpu_custom_call.1} parent=27 // pred_region
          %190 = dma.done %s182, 128
        $region32: #{tpu_custom_call.1} parent=27 // pred_fallthru
          _
        %s191 = sand.u32 %s72, 1
        %s192 = scalar_lea.sflag [#allocation8], %s191
        %s193 = sand.u32 %s72, 1
        %s194 = smul.addr %s193, 8
        %s195 = scalar_lea.vmem [#allocation7], %s194
        // Predicated region
        $region33: #{tpu_custom_call.1} parent=27 // pred_check
          %p196 = pneg %p85
        $region34: #{tpu_custom_call.1} parent=27 // pred_check_branch
          %198 = sbr.rel (%p196) target = $region36
        $region35: #{tpu_custom_call.1} parent=27 // pred_region
          %200 = dma.done %s192, 128
        $region36: #{tpu_custom_call.1} parent=27 // pred_fallthru
          _
        %s201 = sand.u32 %s44, 1
        %s202 = scalar_lea.sflag [#allocation5], %s201
        %s203 = sand.u32 %s44, 1
        %s204 = smul.addr %s203, 8
        %s205 = scalar_lea.vmem [#allocation4], %s204
        %p206 = pneg %p57
        %p207 = pneg %p54
        %s208 = sand.u32 %s72, 1
        %s209 = scalar_lea.sflag [#allocation8], %s208
        %s210 = sand.u32 %s72, 1
        %s211 = smul.addr %s210, 8
        %s212 = scalar_lea.vmem [#allocation7], %s211
        %p213 = pneg %p85
        %p214 = pneg %p82
        %p215 = pneg %p111
        %p216 = pneg %p108
        %s217 = sand.u32 %s98, 1
        %s218 = scalar_lea.sflag [#allocation6], %s217
        %s219 = sand.u32 %s98, 1
        %s220 = smul.addr %s219, 8
        %s221 = scalar_lea.vmem [#allocation9], %s220
        %p222 = scmp.eq.s32.totalorder %s27, 0
        // Predicated region
        $region37: #{tpu_custom_call.1} parent=27 // pred_check
          %p223 = pneg %p222
        $region38: #{tpu_custom_call.1} parent=27 // pred_check_branch
          %225 = sbr.rel (%p223) target = $region40
        $region39: #{tpu_custom_call.1} parent=27 // pred_region
          %v226 = vlaneseq
          %vm227 = vcmp.ge.s32.totalorder %v226, 0
          %vm228 = vcmp.lt.s32.totalorder %v226, 512
          %vm229 = vmand %vm227, %vm228
          %230 = vst.msk [vmem:[#allocation2] sm:$0xf] %vm229, 0.0
          %231 = vst.msk [vmem:[#allocation3] sm:$0xf] %vm229, 0.0
        $region40: #{tpu_custom_call.1} parent=27 // pred_fallthru
          _
        %v232 = vld [vmem:[%s185] sm:$0xff]
        %v233 = vld [vmem:[%s195] sm:$0xff]
        %vm234 = vcmp.ge.f32.partialorder %v232, 0.5
        %v235 = vld [vmem:[#allocation2] sm:$0xf]
        %v236 = vsel %vm234, %v233, 0.0
        %238 = vst [vmem:[#allocation1] ss:$4 sm:$0xff] %v236
        %v239 = vld.sshfl [vmem:[#allocation1] sm:$0xff pattern:$0x73625140]
        %v240 = vld.sshfl [vmem:[#allocation1 + $0x8] sm:$0xff pattern:$0x73625140]
        %v241 = vld.sshfl [vmem:[#allocation1 + $0x10] sm:$0xff pattern:$0x73625140]
        %v242 = vld.sshfl [vmem:[#allocation1 + $0x18] sm:$0xff pattern:$0x73625140]
        %vm247 = vcmask 1041408
        %v248 = vsel %vm247, %v239, 0.0
        %v249 = vrot.slane %v248, 4
        %v250 = vadd.f32 %v248, %v249
        %v251 = vrot.slane %v250, 2
        %v252 = vadd.f32 %v250, %v251
        %v253 = vrot.slane %v252, 1
        %v254 = vadd.f32 %v252, %v253
        %v255 = vsel %vm247, %v240, 0.0
        %v256 = vrot.slane %v255, 4
        %v257 = vadd.f32 %v255, %v256
        %v258 = vrot.slane %v257, 2
        %v259 = vadd.f32 %v257, %v258
        %v260 = vrot.slane %v259, 1
        %v261 = vadd.f32 %v259, %v260
        %v262 = vsel %vm247, %v241, 0.0
        %v263 = vrot.slane %v262, 4
        %v264 = vadd.f32 %v262, %v263
        %v265 = vrot.slane %v264, 2
        %v266 = vadd.f32 %v264, %v265
        %v267 = vrot.slane %v266, 1
        %v268 = vadd.f32 %v266, %v267
        %v269 = vsel %vm247, %v242, 0.0
        %v270 = vrot.slane %v269, 4
        %v271 = vadd.f32 %v269, %v270
        %v272 = vrot.slane %v271, 2
        %v273 = vadd.f32 %v271, %v272
        %v274 = vrot.slane %v273, 1
        %v275 = vadd.f32 %v273, %v274
        %v280 = vrot.slane %v261, 7
        %v281 = vrot.slane %v268, 6
        %v282 = vrot.slane %v275, 5
        %vm283 = vcmask 1040384
        %v284 = vsel %vm283, %v254, %v280
        %vm285 = vcmask 1042434
        %v286 = vsel %vm285, %v281, %v282
        %v287 = vsel %vm247, %v284, %v286
        %v289 = vadd.f32 %v235, %v287
        %v290 = vlaneseq
        %vm291 = vcmp.ge.s32.totalorder %v290, 0
        %vm292 = vcmp.lt.s32.totalorder %v290, 512
        %vm293 = vmand %vm291, %vm292
        %294 = vst.msk [vmem:[#allocation2] sm:$0xf] %vm293, %v289
        %v295 = vld [vmem:[#allocation3] sm:$0xf]
        %v296 = vsel %vm234, 1, 0
        %v297 = vcvt.s32.f32 %v296
        %v298 = vadd.f32 %v233, %v297
        %300 = vst [vmem:[#allocation1] ss:$4 sm:$0xff] %v298
        %v301 = vld.sshfl [vmem:[#allocation1] sm:$0xff pattern:$0x73625140]
        %v302 = vld.sshfl [vmem:[#allocation1 + $0x8] sm:$0xff pattern:$0x73625140]
        %v303 = vld.sshfl [vmem:[#allocation1 + $0x10] sm:$0xff pattern:$0x73625140]
        %v304 = vld.sshfl [vmem:[#allocation1 + $0x18] sm:$0xff pattern:$0x73625140]
        %v309 = vsel %vm247, %v301, 0.0
        %v310 = vrot.slane %v309, 4
        %v311 = vadd.f32 %v309, %v310
        %v312 = vrot.slane %v311, 2
        %v313 = vadd.f32 %v311, %v312
        %v314 = vrot.slane %v313, 1
        %v315 = vadd.f32 %v313, %v314
        %v316 = vsel %vm247, %v302, 0.0
        %v317 = vrot.slane %v316, 4
        %v318 = vadd.f32 %v316, %v317
        %v319 = vrot.slane %v318, 2
        %v320 = vadd.f32 %v318, %v319
        %v321 = vrot.slane %v320, 1
        %v322 = vadd.f32 %v320, %v321
        %v323 = vsel %vm247, %v303, 0.0
        %v324 = vrot.slane %v323, 4
        %v325 = vadd.f32 %v323, %v324
        %v326 = vrot.slane %v325, 2
        %v327 = vadd.f32 %v325, %v326
        %v328 = vrot.slane %v327, 1
        %v329 = vadd.f32 %v327, %v328
        %v330 = vsel %vm247, %v304, 0.0
        %v331 = vrot.slane %v330, 4
        %v332 = vadd.f32 %v330, %v331
        %v333 = vrot.slane %v332, 2
        %v334 = vadd.f32 %v332, %v333
        %v335 = vrot.slane %v334, 1
        %v336 = vadd.f32 %v334, %v335
        %v341 = vrot.slane %v322, 7
        %v342 = vrot.slane %v329, 6
        %v343 = vrot.slane %v336, 5
        %v344 = vsel %vm283, %v315, %v341
        %v345 = vsel %vm285, %v342, %v343
        %v346 = vsel %vm247, %v344, %v345
        %v348 = vadd.f32 %v295, %v346
        %349 = vst.msk [vmem:[#allocation3] sm:$0xf] %vm293, %v348
        // Predicated region
        $region41: #{tpu_custom_call.1} parent=27 // pred_check
          %p350 = pneg %p222
        $region42: #{tpu_custom_call.1} parent=27 // pred_check_branch
          %352 = sbr.rel (%p350) target = $region44
        $region43: #{tpu_custom_call.1} parent=27 // pred_region
          %v353 = vld [vmem:[#allocation2] sm:$0xf]
          %v355 = vperm.slane %v353, 0
          %v356 = vperm.slane %v353, 1
          %v357 = vperm.slane %v353, 2
          %v358 = vperm.slane %v353, 3
          %v363 = vsel %vm283, %v355, 0.0
          %v364 = vsel %vm283, %v356, 0.0
          %v365 = vadd.f32 %v363, %v364
          %v366 = vsel %vm283, %v357, 0.0
          %v367 = vadd.f32 %v365, %v366
          %v368 = vsel %vm283, %v358, 0.0
          %v369 = vadd.f32 %v367, %v368
          %370 = vadd.xlane.f32.xlu0 %v369
          %v371 = vpop.xlane.xlu0 %370
          %v372 = vrot.slane %v371, 4
          %v373 = vadd.f32 %v371, %v372
          %v374 = vrot.slane %v373, 2
          %v375 = vadd.f32 %v373, %v374
          %v376 = vrot.slane %v375, 1
          %v377 = vadd.f32 %v375, %v376
          %s378 = vtos %v377
          %v379 = vld [vmem:[#allocation3] sm:$0xf]
          %v381 = vperm.slane %v379, 0
          %v382 = vperm.slane %v379, 1
          %v383 = vperm.slane %v379, 2
          %v384 = vperm.slane %v379, 3
          %v389 = vsel %vm283, %v381, 0.0
          %v390 = vsel %vm283, %v382, 0.0
          %v391 = vadd.f32 %v389, %v390
          %v392 = vsel %vm283, %v383, 0.0
          %v393 = vadd.f32 %v391, %v392
          %v394 = vsel %vm283, %v384, 0.0
          %v395 = vadd.f32 %v393, %v394
          %396 = vadd.xlane.f32.xlu0 %v395
          %v397 = vpop.xlane.xlu0 %396
          %v398 = vrot.slane %v397, 4
          %v399 = vadd.f32 %v397, %v398
          %v400 = vrot.slane %v399, 2
          %v401 = vadd.f32 %v399, %v400
          %v402 = vrot.slane %v401, 1
          %v403 = vadd.f32 %v401, %v402
          %s404 = vtos %v403
          %s405 = ssub.f32 %s404, %s378
          %s406 = sadd.f32 %s405, 1e-05
          %v407 = vstv %s406
          %v408 = vrcp.pop %v407
          %v409 = vmul.f32 %v407, %v408
          %v410 = vsub.f32 1.0, %v409
          %v411 = vmul.f32 %v408, %v410
          %v412 = vadd.f32 %v408, %v411
          %vm413 = vweird.f32 %v407
          %vm414 = vweird.f32 %v408
          %vm415 = vmor %vm413, %vm414
          %v416 = vsel %vm415, %v408, %v412
          %v417 = vand.u32 2147483647, %v407
          %vm418 = vcmp.eq.f32.partialorder %v417, 8.507059e+37
          %v419 = vand.u32 %v407, 2147483648
          %v420 = vor.u32 1.1754944e-38, %v419
          %v421 = vsel %vm418, %v420, %v416
          %s422 = vtos %v421
          %s423 = smul.f32 %s378, %s422
          %v424 = vstv %s423
          %425 = vst [vmem:[%s221] sm:$0xff] %v424
        $region44: #{tpu_custom_call.1} parent=27 // pred_fallthru
          _
        %s426 = sand.u32 %s98, 1
        %s427 = scalar_lea.sflag [#allocation6], %s426
        %s428 = sand.u32 %s98, 1
        %s429 = smul.addr %s428, 8
        %s430 = scalar_lea.vmem [#allocation9], %s429
        // Predicated region
        $region45: #{tpu_custom_call.1} parent=27 // pred_check
          %p431 = pneg %p108
        $region46: #{tpu_custom_call.1} parent=27 // pred_check_branch
          %433 = sbr.rel (%p431) target = $region48
        $region47: #{tpu_custom_call.1} parent=27 // pred_region
          %435 = vsyncadd %s427, 0
          %s436 = smul.addr %s26, 8
          %s437 = scalar_lea.hbm %s2, %s436
          %s439 = sshll.u32 %s430, 4
          %s440 = int_to_ptr.vmem [resolvable:$true] %s439
          %s441 = sshll.u32 %s437, 4
          %s442 = int_to_ptr.hbm [resolvable:$true] %s441
          %444 = dma.vmem_to_hbm [thread:$0]  %s440, 128, %s442, %s427
        $region48: #{tpu_custom_call.1} parent=27 // pred_fallthru
          _
      $region28: #{tpu_custom_call.1} parent=5 // pred_fallthru
        _
      %p445 = scmp.le.s32.totalorder 2, %s17
      // Predicated region
      $region49: #{tpu_custom_call.1} parent=5 // pred_check
        %p446 = pneg %p445
      $region50: #{tpu_custom_call.1} parent=5 // pred_check_branch
        %448 = sbr.rel (%p446) target = $region52
      $region51: #{tpu_custom_call.1} parent=5 // pred_region
        %s449 = ssub.s32 %s17, 2
        // Predicated region
        $region53: #{tpu_custom_call.1} parent=51 // pred_check
          %p450 = pneg %p114
        $region54: #{tpu_custom_call.1} parent=51 // pred_check_branch
          %452 = sbr.rel (%p450) target = $region56
        $region55: #{tpu_custom_call.1} parent=51 // pred_region
          %s453 = sand.u32 %s99, 1
          %s454 = scalar_lea.sflag [#allocation6], %s453
          %s455 = sand.u32 %s99, 1
          %s456 = smul.addr %s455, 8
          %s457 = scalar_lea.vmem [#allocation9], %s456
          %459 = dma.done %s454, 128
        $region56: #{tpu_custom_call.1} parent=51 // pred_fallthru
          _
      $region52: #{tpu_custom_call.1} parent=5 // pred_fallthru
        _
    $region6: #{tpu_custom_call.1} parent=1 // loop_footer
      %s21 = sadd.s32 1, %s17
    $region7: #{tpu_custom_call.1} parent=1 // loop_footer_branch
      %16 = sbr.rel target = $region3
    $region8: #{tpu_custom_call.1} parent=1 // loop_exit
      _
    %460 = vsyncpa [#allocation5], 1
    %s461 = scalar_lea.sflag [#allocation5], 1
    %462 = vsyncpa %s461, 1
    %463 = vsyncpa [#allocation8], 1
    %s464 = scalar_lea.sflag [#allocation8], 1
    %465 = vsyncpa %s464, 1
    %466 = vsyncpa [#allocation6], 1
    %s467 = scalar_lea.sflag [#allocation6], 1
    %468 = vsyncpa %s467, 1

</llo_original>
